<compile_context>
chip_gen: v7x
topology: tpu7x:2x2x1
jax: 0.10.0
libtpu: 0.0.40
codegen_flags: <defaults>
</compile_context>

<pallas_src>
import jax
import jax.numpy as jnp
from jax.experimental import pallas as pl
from jax.experimental.pallas import tpu as pltpu


# ----------------------------- Pass A kernel --------------------------------

def _abs_sum_kernel(x_ref, s_ref):
    """x_ref: (bn, tc, T*V) tile; s_ref: (bn, 1, T*V) f32 accumulator resident
    across the channel-tile (last, 'arbitrary') grid axis."""
    @pl.when(pl.program_id(1) == 0)
    def _init():
        s_ref[...] = jnp.zeros_like(s_ref)

    # abs in the input dtype, accumulate in f32 (halves transient vreg/VMEM
    # footprint for bf16 inputs; compute is hidden under DMA either way).
    s_ref[...] += jnp.sum(jnp.abs(x_ref[...]), axis=1, keepdims=True,
                          dtype=jnp.float32)


# ----------------------------- Pass C kernel --------------------------------

def _apply_mask_kernel(x_ref, m_ref, lane_v_ref, o_ref):
    """x_ref/o_ref: (bn, tc, T*V); m_ref: (bn, 1, V) f32 scaled mask;
    lane_v_ref: (1, T*V) int32 with lane_v[j] = j % V.

    The (bn, 1, T*V) mask row is rebuilt here with V static select/adds
    instead of materialising an (N, T, V) broadcast in HBM.  Only standard
    VPU ops are used and the work hides completely under the tile DMA."""
    xv = x_ref[...]
    lane_v = lane_v_ref[...]                      # (1, T*V) int32
    m = m_ref[...].astype(jnp.float32)            # (bn, 1, V)
    num_point = m.shape[2]
    expanded = jnp.zeros((m.shape[0], 1, lane_v.shape[1]), jnp.float32)
    for vv in range(num_point):                   # static V (=25) iterations
        expanded = expanded + jnp.where(lane_v == vv, m[:, :, vv:vv + 1], 0.0)
    # Multiply in x's dtype (rescale quantised to bf16 for bf16 inputs, same
    # as folding the scale into the mask; exact for f32 inputs).
    o_ref[...] = xv * expanded.astype(xv.dtype)


# ----------------------------- tiling helpers --------------------------------

def _vmem_capacity_bytes():
    try:
        info = pltpu.get_tpu_info()
        cap = int(getattr(info, "vmem_capacity_bytes", 0) or 0)
        if cap > 0:
            return cap
    except Exception:
        pass
    return 64 * 1024 * 1024      # conservative default (v7x-sized VMEM)


def _choose_tiles(n, c, tv, itemsize, tile_budget_bytes):
    """Pick (bn, tc): bn | N, tc | C with tc % 8 == 0 (or tc == C), sized so a
    (bn, tc, T*V) tile approaches tile_budget_bytes (>= ~1-2 MiB grid steps
    amortise the ~0.35 us per-step pipeline overhead), while keeping >= 2
    steps on the parallel batch axis whenever N >= 2 (megacore balance)."""
    row = tv * itemsize

    def fits(bn, tc):
        return bn * tc * row <= tile_budget_bytes

    if fits(1, c) or c % 8 != 0:
        tc = c                               # full channel extent is always legal
    else:
        tc = 8
        for cand in range(8, c + 1, 8):
            if c % cand == 0 and fits(1, cand):
                tc = cand

    bn = 1
    for cand in range(1, n + 1):
        if n % cand != 0 or not fits(cand, tc):
            continue
        if n >= 2 and cand == n:             # keep >= 2 parallel grid steps
            continue
        bn = cand
    return bn, tc


# ----------------------------- main wrapper ----------------------------------

def dropblock_ske(x, A, keep_prob, *, num_point, block_size=7,
                  training=True, key=None, donate_input=False):
    """JAX/Pallas equivalent of DropBlock_Ske.forward(input, keep_prob, A).

    `keep_prob` / `training` must be static Python values (same trace-time
    gate as the PyTorch module).  Set donate_input=True only if x is not
    consumed elsewhere: the Pass C output then aliases x's HBM buffer.
    """
    if (not training) or keep_prob == 1:
        return x
    if key is None:
        key = jax.random.PRNGKey(0)

    n, c, t, v = x.shape
    assert v == num_point, "last input dim must equal num_point"
    tv = t * v

    if num_point == 25:
        gamma = (1.0 - keep_prob) / (1 + 1.92)
    elif num_point == 20:
        gamma = (1.0 - keep_prob) / (1 + 1.9)
    else:
        gamma = (1.0 - keep_prob) / (1 + 1.92)

    x3 = x.reshape(n, c, tv)                 # lane-dense view (free reshape)
    itemsize = x3.dtype.itemsize

    vmem_cap = _vmem_capacity_bytes()
    # ~4 MiB/tile on v7x (64 MiB VMEM), ~8 MiB/tile on v5e/v6e (128 MiB VMEM).
    tile_budget = max(vmem_cap // 16, 2 * 1024 * 1024)
    bn, tc = _choose_tiles(n, c, tv, itemsize, tile_budget)
    gn, gc = n // bn, c // tc
    tile_bytes = bn * tc * tv * itemsize
    # 2x double-buffered input + 2x output tiles + slack, capped per chip
    # (explicit because v5e's default scoped VMEM is only 16 MiB).
    vmem_limit = int(min(max(4 * tile_bytes + 4 * 1024 * 1024,
                             32 * 1024 * 1024),
                         vmem_cap * 3 // 4))

    # ---- Pass A: per-(n, t*v) sum of |x| over channels. ----
    sums = pl.pallas_call(
        _abs_sum_kernel,
        out_shape=jax.ShapeDtypeStruct((n, 1, tv), jnp.float32),
        grid=(gn, gc),
        in_specs=[pl.BlockSpec((bn, tc, tv), lambda i, j: (i, j, 0))],
        out_specs=pl.BlockSpec((bn, 1, tv), lambda i, j: (i, 0, 0)),
        compiler_params=pltpu.CompilerParams(
            dimension_semantics=("parallel", "arbitrary"),
            vmem_limit_bytes=vmem_limit),
        cost_estimate=pl.CostEstimate(
            flops=2 * n * c * tv, transcendentals=0,
            bytes_accessed=n * c * tv * itemsize + n * tv * 4),
    )(x3)

    # ---- Pass B: tiny (N, V) mask math in plain JAX. ----
    # mean over (c, t) == torch's mean(dim=2) then mean(dim=1)
    input_abs = sums.reshape(n, t, v).sum(axis=1) / jnp.float32(c * t)
    input_abs = input_abs / jnp.sum(input_abs) * jnp.float32(n * v)
    p = jnp.minimum(input_abs * jnp.float32(gamma), 1.0)
    # TODO(synk): torch.bernoulli uses torch's RNG stream; the draw (not the
    # distribution) differs here because we use jax.random.
    u = jax.random.uniform(key, (n, v), dtype=jnp.float32)
    m_seed = (u < p).astype(jnp.float32)                   # Bernoulli(p)
    m = m_seed @ A.astype(jnp.float32)                     # (n, v)
    m = jnp.where(m > 0.001, 1.0, 0.0)   # == torch's M[M>0.001]=1; M[M<0.5]=0
    mask = 1.0 - m
    mask_sum = jnp.sum(mask)
    # Guard the degenerate all-dropped case (PyTorch would emit inf/NaN here).
    scale = jnp.float32(n * v) / jnp.where(mask_sum == 0, 1.0, mask_sum)
    scaled3 = (mask * scale)[:, None, :]                   # (N, 1, V) f32
    lane_v = jnp.tile(jnp.arange(v, dtype=jnp.int32), t)[None, :]  # (1, T*V)

    # ---- Pass C: apply the scaled mask, lane-dense last dim, mask expanded
    #      in-kernel (no HBM broadcast round-trip). ----
    out3 = pl.pallas_call(
        _apply_mask_kernel,
        out_shape=jax.ShapeDtypeStruct((n, c, tv), x.dtype),
        grid=(gn, gc),
        in_specs=[pl.BlockSpec((bn, tc, tv), lambda i, j: (i, j, 0)),
                  pl.BlockSpec((bn, 1, v), lambda i, j: (i, 0, 0)),
                  pl.BlockSpec((1, tv), lambda i, j: (0, 0))],
        out_specs=pl.BlockSpec((bn, tc, tv), lambda i, j: (i, j, 0)),
        input_output_aliases=({0: 0} if donate_input else {}),
        compiler_params=pltpu.CompilerParams(
            dimension_semantics=("parallel", "parallel"),
            vmem_limit_bytes=vmem_limit),
        cost_estimate=pl.CostEstimate(
            flops=n * c * tv + 3 * n * v * tv, transcendentals=0,
            bytes_accessed=2 * n * c * tv * itemsize + n * v * 4 + tv * 4),
    )(x3, scaled3, lane_v)

    return out3.reshape(n, c, t, v)


# ---------------- Pure-JAX reference (same math, same RNG draw) -------------

def _reference(x, A, keep_prob, num_point, key):
    n, c, t, v = x.shape
    if num_point == 25:
        gamma = (1.0 - keep_prob) / (1 + 1.92)
    elif num_point == 20:
        gamma = (1.0 - keep_prob) / (1 + 1.9)
    else:
        gamma = (1.0 - keep_prob) / (1 + 1.92)
    xf = x.astype(jnp.float32)
    input_abs = jnp.sum(jnp.abs(xf), axis=(1, 2)) / jnp.float32(c * t)
    input_abs = input_abs / jnp.sum(input_abs) * jnp.float32(n * v)
    p = jnp.minimum(input_abs * jnp.float32(gamma), 1.0)
    u = jax.random.uniform(key, (n, v), dtype=jnp.float32)
    m_seed = (u < p).astype(jnp.float32)
    m = jnp.where(m_seed @ A.astype(jnp.float32) > 0.001, 1.0, 0.0)
    mask = 1.0 - m
    ms = jnp.sum(mask)
    scale = jnp.float32(n * v) / jnp.where(ms == 0, 1.0, ms)
    scaled = (mask * scale).astype(x.dtype)
    return x * scaled[:, None, None, :]


if __name__ == "__main__":
    key = jax.random.PRNGKey(0)
    k_x, k_a, k_drop = jax.random.split(key, 3)

    # Small shapes consistent with the module: N=2, C=4, T=16, V=num_point=25.
    N, C, T, V = 2, 4, 16, 25
    x = jax.random.normal(k_x, (N, C, T, V), dtype=jnp.float32)

    # Deterministic synthetic skeleton adjacency (nonnegative, self loops).
    A = (jax.random.uniform(k_a, (V, V)) > 0.8).astype(jnp.float32)
    A = A + jnp.eye(V, dtype=jnp.float32)

    out = dropblock_ske(x, A, keep_prob=0.9, num_point=V,
                        training=True, key=k_drop)
    out = jax.block_until_ready(out)
    assert out.shape == x.shape and out.dtype == x.dtype

    ref = _reference(x, A, 0.9, V, k_drop)
    assert jnp.allclose(out, ref, rtol=1e-5, atol=1e-5), \
        "Pallas output does not match pure-JAX reference"

    # Eval / keep_prob == 1 path returns the input unchanged.
    assert dropblock_ske(x, A, keep_prob=1.0, num_point=V, training=True) is x

    print("KERNEL_OK")
</pallas_src>

<mosaic_0001>
module attributes {stable_mosaic.version = 11 : i64} {
  func.func @_abs_sum_kernel(%arg0: i32, %arg1: i32, %arg2: memref<1x4x400xf32, #tpu.memory_space<vmem>>, %arg3: memref<1x1x400xf32, #tpu.memory_space<vmem>>) attributes {dimension_semantics = [#tpu.dimension_semantics<parallel>, #tpu.dimension_semantics<arbitrary>], iteration_bounds = array<i64: 2, 1>, scalar_prefetch = 0 : i64, scratch_operands = 0 : i64, tpu.core_type = #tpu.core_type<tc>, window_params = [{transform_indices = @transform_0, window_bounds = array<i64: 1, 4, 400>}, {transform_indices = @transform_1, window_bounds = array<i64: 1, 1, 400>}]} {
    %c0_i32 = arith.constant 0 : i32
    %0 = arith.cmpi eq, %arg1, %c0_i32 : i32
    %1 = arith.extui %0 : i1 to i32
    %c0_i32_0 = arith.constant 0 : i32
    %2 = arith.cmpi ne, %1, %c0_i32_0 : i32
    scf.if %2 {
      %cst_9 = arith.constant 0.000000e+00 : f32
      %10 = vector.broadcast %cst_9 : f32 to vector<1x1x400xf32>
      %c0_10 = arith.constant 0 : index
      %c0_11 = arith.constant 0 : index
      %c0_12 = arith.constant 0 : index
      %11 = vector.load %arg3[%c0_10, %c0_11, %c0_12] : memref<1x1x400xf32, #tpu.memory_space<vmem>>, vector<1x1x400xf32>
      tpu.vector_store %arg3[%c0_10, %c0_11, %c0_12], %10 {strides = array<i32>} : memref<1x1x400xf32, #tpu.memory_space<vmem>>, vector<1x1x400xf32>,
    } else {
    }
    %c0 = arith.constant 0 : index
    %c0_1 = arith.constant 0 : index
    %c0_2 = arith.constant 0 : index
    %3 = vector.load %arg3[%c0, %c0_1, %c0_2] : memref<1x1x400xf32, #tpu.memory_space<vmem>>, vector<1x1x400xf32>
    %c0_3 = arith.constant 0 : index
    %c0_4 = arith.constant 0 : index
    %c0_5 = arith.constant 0 : index
    %4 = vector.load %arg2[%c0_3, %c0_4, %c0_5] : memref<1x4x400xf32, #tpu.memory_space<vmem>>, vector<1x4x400xf32>
    %5 = math.absf %4 : vector<1x4x400xf32>
    %cst = arith.constant dense<0.000000e+00> : vector<1x400xf32>
    %6 = vector.multi_reduction <add>, %5, %cst [1] : vector<1x4x400xf32> to vector<1x400xf32>
    %7 = vector.shape_cast %6 : vector<1x400xf32> to vector<1x1x400xf32>
    %8 = arith.addf %3, %7 : vector<1x1x400xf32>
    %c0_6 = arith.constant 0 : index
    %c0_7 = arith.constant 0 : index
    %c0_8 = arith.constant 0 : index
    %9 = vector.load %arg3[%c0_6, %c0_7, %c0_8] : memref<1x1x400xf32, #tpu.memory_space<vmem>>, vector<1x1x400xf32>
    tpu.vector_store %arg3[%c0_6, %c0_7, %c0_8], %8 {strides = array<i32>} : memref<1x1x400xf32, #tpu.memory_space<vmem>>, vector<1x1x400xf32>,
    return
  }
  func.func @transform_0(%arg0: i32, %arg1: i32) -> (i32, i32, i32) {
    %c0_i32 = arith.constant 0 : i32
    %c0_i32_0 = arith.constant 0 : i32
    return %arg0, %arg1, %c0_i32 : i32, i32, i32
  }
  func.func @transform_1(%arg0: i32, %arg1: i32) -> (i32, i32, i32) {
    %c0_i32 = arith.constant 0 : i32
    %c0_i32_0 = arith.constant 0 : i32
    %c0_i32_1 = arith.constant 0 : i32
    return %arg0, %c0_i32, %c0_i32_0 : i32, i32, i32
  }
}

</mosaic_0001>

<llo_original>
// kernel: tpu_custom_call.1
$region0: #{tpu_custom_call.1}
  #allocation0 [shape = 'u32[]', space=smem, size = 0x4, offset = 0x4, fixed_abs, tag = 'smem constant byte address 0x4 - core index']
  #allocation1 [shape = 'u32[144,128]{1,0:T(1,128)}', space=vmem, size = 0x12000, scoped, tag = 'internal scratch']
  %s0 = inlined_call_operand.hbm [shape: f32[2,4,400], index: 0, kind: input, shape index: {}]
  %s1 = inlined_call_operand.hbm [shape: f32[2,1,400], index: 1, kind: output, shape index: {}]
  %s2 = sld [smem:[#allocation0]]
  $region45: #{tpu_custom_call.1} parent=0
    _
  %s4 = ssub.s32 1, %s2
  %s5 = scalar_select 0, %s4, %s2
  $region1: #{tpu_custom_call.1} parent=0
    #allocation2 [shape = 'u8[16384]{0}', space=vmem, size = 0x4000, scoped, tag = 'input window, operand 0']
    #allocation3 [shape = 's32[2]{0}', space=sflag, size = 0x8, scoped, tag = 'scoped memory for tpu_custom_call.1']
    #allocation4 [shape = 's32[2]{0}', space=sflag, size = 0x8, scoped, tag = 'scoped memory for tpu_custom_call.1']
    #allocation5 [shape = 'u8[4096]{0}', space=vmem, size = 0x1000, scoped, tag = 'output window, operand 0']
    %6 = vsyncpa [#allocation3], 0
    %s7 = scalar_lea.sflag [#allocation3], 1
    %8 = vsyncpa %s7, 0
    %9 = vsyncpa [#allocation4], 0
    %s10 = scalar_lea.sflag [#allocation4], 1
    %11 = vsyncpa %s10, 0
    loop: start=0, step=1, limit=4
    $region2: #{tpu_custom_call.1} parent=1 // loop_pre_header
      _
    $region3: #{tpu_custom_call.1} parent=1 // loop_header
      %s13 = sphi 0, %s17
      %p14 = scmp.ge.s32.totalorder %s13, 4
      %s20 = sphi 0, %s32
      %s21 = sphi 0, %s28
      %s22 = sphi 0, %s20
      %s23 = sphi 0, %s21
      %s24 = sphi 0, %s22
      %s25 = sphi 0, %s23
      %s37 = sphi 0, %s39
      %s40 = sphi 0, %s37
      %s41 = sphi 0, %s40
      %s57 = sphi 0, %s41
      %s63 = sphi 0, %s65
      %s66 = sphi 0, %s63
      %s67 = sphi 0, %s66
      %s83 = sphi 0, %s67
    $region4: #{tpu_custom_call.1} parent=1 // loop_header_branch
      %16 = sbr.rel (%p14) target = $region8
    $region5: #{tpu_custom_call.1} parent=1 // loop_body
      %s18 = ssub.s32 %s13, 1
      %s19 = ssub.s32 %s13, 2
      %s26 = sadd.s32 1, %s21
      %p27 = scmp.ge.s32.totalorder %s26, 1
      %s28 = scalar_select %p27, 0, %s26
      %s29 = sadd.s32 1, %s20
      %s30 = scalar_select %p27, %s29, %s20
      %p31 = scmp.ge.s32.totalorder %s30, 2
      %s32 = scalar_select %p31, 0, %s30
      %s33 = ssub.s32 %s20, %s32
      %s34 = ssub.s32 %s21, %s28
      %s35 = sor.u32 %s33, %s34
      %p36 = scmp.eq.s32.totalorder %s35, 0
      %s38 = sadd.s32 %s37, 1
      %s39 = scalar_select %p36, %s37, %s38
      %p42 = pneg %p36
      %p43 = scmp.eq.s32.totalorder %s13, 1
      %p44 = por %p42, %p43
      %p45 = scmp.ne.s32.totalorder %s37, %s40
      %p46 = scmp.eq.s32.totalorder %s13, 0
      %p47 = por %p45, %p46
      %p48 = scmp.ne.s32.totalorder %s37, %s40
      %p49 = scmp.eq.s32.totalorder %s18, 1
      %p50 = por %p48, %p49
      %p51 = scmp.ne.s32.totalorder %s40, %s41
      %p52 = scmp.eq.s32.totalorder %s18, 0
      %p53 = por %p51, %p52
      %p54 = scmp.ne.s32.totalorder %s40, %s41
      %p55 = scmp.eq.s32.totalorder %s19, 1
      %p56 = por %p54, %p55
      %p58 = scmp.ne.s32.totalorder %s41, %s57
      %p59 = scmp.eq.s32.totalorder %s19, 0
      %p60 = por %p58, %p59
      %s61 = ssub.s32 %s20, %s32
      %p62 = scmp.eq.s32.totalorder %s61, 0
      %s64 = sadd.s32 %s63, 1
      %s65 = scalar_select %p62, %s63, %s64
      %p68 = pneg %p62
      %p69 = scmp.eq.s32.totalorder %s13, 1
      %p70 = por %p68, %p69
      %p71 = scmp.ne.s32.totalorder %s63, %s66
      %p72 = scmp.eq.s32.totalorder %s13, 0
      %p73 = por %p71, %p72
      %p74 = scmp.ne.s32.totalorder %s63, %s66
      %p75 = scmp.eq.s32.totalorder %s18, 1
      %p76 = por %p74, %p75
      %p77 = scmp.ne.s32.totalorder %s66, %s67
      %p78 = scmp.eq.s32.totalorder %s18, 0
      %p79 = por %p77, %p78
      %p80 = scmp.ne.s32.totalorder %s66, %s67
      %p81 = scmp.eq.s32.totalorder %s19, 1
      %p82 = por %p80, %p81
      %p84 = scmp.ne.s32.totalorder %s67, %s83
      %p85 = scmp.eq.s32.totalorder %s19, 0
      %p86 = por %p84, %p85
      %p87 = scmp.le.s32.totalorder 1, %s13
      %p88 = scmp.lt.s32.totalorder %s13, 3
      %p89 = pnand %p87, %p88
      %p90 = pneg %p89
      // Predicated region
      $region9: #{tpu_custom_call.1} parent=5 // pred_check
        _
      $region10: #{tpu_custom_call.1} parent=5 // pred_check_branch
        %92 = sbr.rel (%p89) target = $region12
      $region11: #{tpu_custom_call.1} parent=5 // pred_region
        %s93 = ssub.s32 %s13, 1
      $region12: #{tpu_custom_call.1} parent=5 // pred_fallthru
        _
      %p94 = scmp.lt.s32.totalorder %s13, 2
      // Predicated region
      $region13: #{tpu_custom_call.1} parent=5 // pred_check
        %p95 = pneg %p94
      $region14: #{tpu_custom_call.1} parent=5 // pred_check_branch
        %97 = sbr.rel (%p95) target = $region16
      $region15: #{tpu_custom_call.1} parent=5 // pred_region
        // Predicated region
        $region17: #{tpu_custom_call.1} parent=15 // pred_check
          %p98 = pneg %p47
        $region18: #{tpu_custom_call.1} parent=15 // pred_check_branch
          %100 = sbr.rel (%p98) target = $region20
        $region19: #{tpu_custom_call.1} parent=15 // pred_region
          %s101 = sand.u32 %s37, 1
          %s102 = scalar_lea.sflag [#allocation3], %s101
          %s103 = sand.u32 %s37, 1
          %s104 = smul.addr %s103, 16
          %s105 = scalar_lea.vmem [#allocation2], %s104
          %s107 = ssub.s32 256, 256
          %108 = vsyncadd %s102, %s107
          %s109 = smul.addr %s21, 4
          %s110 = smul.addr %s20, 4
          %s111 = sadd.s32 %s109, %s110
          %s112 = smul.addr %s111, 64
          %s113 = scalar_lea.hbm %s0, %s112
          %s115 = sshll.u32 %s105, 4
          %s116 = int_to_ptr.vmem [resolvable:$true] %s115
          %118 = dma.hbm_to_vmem [thread:$0]  %s113, 256, %s116, %s102
        $region20: #{tpu_custom_call.1} parent=15 // pred_fallthru
          _
      $region16: #{tpu_custom_call.1} parent=5 // pred_fallthru
        _
      %p119 = scmp.le.s32.totalorder 1, %s13
      %p120 = scmp.lt.s32.totalorder %s13, 3
      %p121 = pnand %p119, %p120
      %p122 = pneg %p121
      // Predicated region
      $region21: #{tpu_custom_call.1} parent=5 // pred_check
        _
      $region22: #{tpu_custom_call.1} parent=5 // pred_check_branch
        %124 = sbr.rel (%p121) target = $region24
      $region23: #{tpu_custom_call.1} parent=5 // pred_region
        %s125 = ssub.s32 %s13, 1
        %s126 = sand.u32 %s40, 1
        %s127 = scalar_lea.sflag [#allocation3], %s126
        %s128 = sand.u32 %s40, 1
        %s129 = smul.addr %s128, 16
        %s130 = scalar_lea.vmem [#allocation2], %s129
        // Predicated region
        $region25: #{tpu_custom_call.1} parent=23 // pred_check
          %p131 = pneg %p53
        $region26: #{tpu_custom_call.1} parent=23 // pred_check_branch
          %133 = sbr.rel (%p131) target = $region28
        $region27: #{tpu_custom_call.1} parent=23 // pred_region
          %134 = dma.done %s127, 256
        $region28: #{tpu_custom_call.1} parent=23 // pred_fallthru
          _
        %s135 = sand.u32 %s40, 1
        %s136 = scalar_lea.sflag [#allocation3], %s135
        %s137 = sand.u32 %s40, 1
        %s138 = smul.addr %s137, 16
        %s139 = scalar_lea.vmem [#allocation2], %s138
        %p140 = pneg %p53
        %p141 = pneg %p50
        %p142 = pneg %p79
        %p143 = pneg %p76
        %s144 = sand.u32 %s66, 1
        %s145 = scalar_lea.sflag [#allocation4], %s144
        %s146 = sand.u32 %s66, 1
        %s147 = smul.addr %s146, 4
        %s148 = scalar_lea.vmem [#allocation5], %s147
        %p149 = scmp.eq.s32.totalorder %s23, 0
        // Predicated region
        $region29: #{tpu_custom_call.1} parent=23 // pred_check
          %p150 = pneg %p149
        $region30: #{tpu_custom_call.1} parent=23 // pred_check_branch
          %152 = sbr.rel (%p150) target = $region32
        $region31: #{tpu_custom_call.1} parent=23 // pred_region
          %v153 = vlaneseq
          %vm154 = vcmp.ge.s32.totalorder %v153, 0
          %vm155 = vcmp.lt.s32.totalorder %v153, 400
          %vm156 = vmand %vm154, %vm155
          %157 = vst.msk [vmem:[%s148] sm:$0xf] %vm156, 0.0
        $region32: #{tpu_custom_call.1} parent=23 // pred_fallthru
          _
        %v158 = vld [vmem:[%s148] sm:$0xf]
        %v159 = vld [vmem:[%s130] sm:$0xff]
        %v160 = vld [vmem:[%s130 + $0x8] sm:$0xff]
        %v161 = vand.u32 2147483647, %v159
        %v162 = vand.u32 2147483647, %v160
        %v165 = vcombine.high %v161, %v161
        %v166 = vcombine.high %v162, %v162
        %vm169 = vcmask 1043456
        %v170 = vsel %vm169, %v161, 0.0
        %v171 = vrot.slane %v170, 4
        %v172 = vadd.f32 %v170, %v171
        %v173 = vrot.slane %v172, 2
        %v174 = vadd.f32 %v172, %v173
        %v175 = vrot.slane %v174, 1
        %v176 = vadd.f32 %v174, %v175
        %v177 = vsel %vm169, %v165, 0.0
        %v178 = vrot.slane %v177, 4
        %v179 = vadd.f32 %v177, %v178
        %v180 = vrot.slane %v179, 2
        %v181 = vadd.f32 %v179, %v180
        %v182 = vrot.slane %v181, 1
        %v183 = vadd.f32 %v181, %v182
        %v184 = vsel %vm169, %v162, 0.0
        %v185 = vrot.slane %v184, 4
        %v186 = vadd.f32 %v184, %v185
        %v187 = vrot.slane %v186, 2
        %v188 = vadd.f32 %v186, %v187
        %v189 = vrot.slane %v188, 1
        %v190 = vadd.f32 %v188, %v189
        %vm191 = vcmask 125952
        %v192 = vsel %vm191, %v166, 0.0
        %v193 = vrot.slane %v192, 4
        %v194 = vadd.f32 %v192, %v193
        %v195 = vrot.slane %v194, 2
        %v196 = vadd.f32 %v194, %v195
        %v197 = vrot.slane %v196, 1
        %v198 = vadd.f32 %v196, %v197
        %v203 = vcombine.low %v176, %v183
        %v204 = vcombine.low %v190, %v198
        %v206 = vunpack.c.l.s4 1966171168
        %v207 = vunpack.c.0.s8 %v206
        %v208 = vlaneseq
        %v209 = vshrl.u32 %v208, 7
        %v210 = vsub.s32 %v207, %v209
        %v211 = vrot.slane %v203, %v210
        %v213 = vunpack.c.l.s4 1966171168
        %v214 = vunpack.c.0.s8 %v213
        %v215 = vlaneseq
        %v216 = vshrl.u32 %v215, 7
        %v217 = vsub.s32 %v214, %v216
        %v218 = vrot.slane %v204, %v217
        %v219 = vcombine.low %v211, %v218
        %v221 = vunpack.c.l.s4 1966171168
        %v222 = vunpack.c.0.s8 %v221
        %v223 = vlaneseq
        %v224 = vshrl.u32 %v223, 7
        %v225 = vsub.s32 %v222, %v224
        %v226 = vrot.slane %v219, %v225
        %v228 = vadd.f32 %v158, %v226
        %v229 = vlaneseq
        %vm230 = vcmp.ge.s32.totalorder %v229, 0
        %vm231 = vcmp.lt.s32.totalorder %v229, 400
        %vm232 = vmand %vm230, %vm231
        %233 = vst.msk [vmem:[%s148] sm:$0xf] %vm232, %v228
        %s234 = sand.u32 %s66, 1
        %s235 = scalar_lea.sflag [#allocation4], %s234
        %s236 = sand.u32 %s66, 1
        %s237 = smul.addr %s236, 4
        %s238 = scalar_lea.vmem [#allocation5], %s237
        // Predicated region
        $region33: #{tpu_custom_call.1} parent=23 // pred_check
          %p239 = pneg %p76
        $region34: #{tpu_custom_call.1} parent=23 // pred_check_branch
          %241 = sbr.rel (%p239) target = $region36
        $region35: #{tpu_custom_call.1} parent=23 // pred_region
          %s243 = ssub.s32 64, 64
          %244 = vsyncadd %s235, %s243
          %s245 = smul.addr %s22, 4
          %s246 = smul.addr %s245, 16
          %s247 = scalar_lea.hbm %s1, %s246
          %s249 = sshll.u32 %s238, 4
          %s250 = int_to_ptr.vmem [resolvable:$true] %s249
          %252 = dma.vmem_to_hbm [thread:$0]  %s250, 64, %s247, %s235
        $region36: #{tpu_custom_call.1} parent=23 // pred_fallthru
          _
      $region24: #{tpu_custom_call.1} parent=5 // pred_fallthru
        _
      %p253 = scmp.le.s32.totalorder 2, %s13
      // Predicated region
      $region37: #{tpu_custom_call.1} parent=5 // pred_check
        %p254 = pneg %p253
      $region38: #{tpu_custom_call.1} parent=5 // pred_check_branch
        %256 = sbr.rel (%p254) target = $region40
      $region39: #{tpu_custom_call.1} parent=5 // pred_region
        %s257 = ssub.s32 %s13, 2
        // Predicated region
        $region41: #{tpu_custom_call.1} parent=39 // pred_check
          %p258 = pneg %p82
        $region42: #{tpu_custom_call.1} parent=39 // pred_check_branch
          %260 = sbr.rel (%p258) target = $region44
        $region43: #{tpu_custom_call.1} parent=39 // pred_region
          %s261 = sand.u32 %s67, 1
          %s262 = scalar_lea.sflag [#allocation4], %s261
          %s263 = sand.u32 %s67, 1
          %s264 = smul.addr %s263, 4
          %s265 = scalar_lea.vmem [#allocation5], %s264
          %266 = dma.done %s262, 64
        $region44: #{tpu_custom_call.1} parent=39 // pred_fallthru
          _
      $region40: #{tpu_custom_call.1} parent=5 // pred_fallthru
        _
    $region6: #{tpu_custom_call.1} parent=1 // loop_footer
      %s17 = sadd.s32 1, %s13
    $region7: #{tpu_custom_call.1} parent=1 // loop_footer_branch
      %12 = sbr.rel target = $region3
    $region8: #{tpu_custom_call.1} parent=1 // loop_exit
      _
    %267 = vsyncpa [#allocation3], 1
    %s268 = scalar_lea.sflag [#allocation3], 1
    %269 = vsyncpa %s268, 1
    %270 = vsyncpa [#allocation4], 1
    %s271 = scalar_lea.sflag [#allocation4], 1
    %272 = vsyncpa %s271, 1

</llo_original>
